<compile_context>
chip_gen: v7x
topology: tpu7x:2x2x1
jax: 0.10.0
libtpu: 0.0.40
codegen_flags: <defaults>
</compile_context>

<pallas_src>
import math

import jax
import jax.numpy as jnp
from jax.experimental import pallas as pl
from jax.experimental.pallas import tpu as pltpu


def _recip(x):
    # EUP approximate reciprocal — used only for softmax normalizations.
    try:
        return pl.reciprocal(x, approx=True)
    except Exception:  # pragma: no cover
        return 1.0 / x


def _sigmoid(z):
    # Exact sigmoid (review: approx reciprocal error compounds through the LSTM state).
    return 1.0 / (1.0 + jnp.exp(-z))


# ----------------------------------------------------------------------------
# HighWay:  out = T * relu(x @ wh + bh) + (1 - T) * x,  T = sigmoid(x @ wt + bt)
# Fused: one (N, H) @ (H, 2H) matmul for both gates.
# ----------------------------------------------------------------------------
def _highway_kernel(x_ref, w_ref, b_ref, o_ref):
    x = x_ref[...]
    H = x.shape[-1]
    z = jnp.dot(x.astype(jnp.bfloat16), w_ref[...],
                preferred_element_type=jnp.float32) + b_ref[...]
    t = _sigmoid(z[:, :H])
    h = jnp.maximum(z[:, H:], 0.0)
    o_ref[...] = t * h + (1.0 - t) * x


def highway(x, wt, bt, wh, bh):
    N, H = x.shape
    w = jnp.concatenate([wt, wh], axis=1).astype(jnp.bfloat16)   # (H, 2H), pre-cast
    b = jnp.concatenate([bt, bh]).reshape(1, 2 * H)
    # TODO(synk): at production B*T sizes tile rows (grid over row chunks).
    return pl.pallas_call(
        _highway_kernel,
        out_shape=jax.ShapeDtypeStruct((N, H), jnp.float32),
        grid=(1,),
        in_specs=[pl.BlockSpec((N, H), lambda i: (0, 0)),
                  pl.BlockSpec((H, 2 * H), lambda i: (0, 0)),
                  pl.BlockSpec((1, 2 * H), lambda i: (0, 0))],
        out_specs=pl.BlockSpec((N, H), lambda i: (0, 0)),
        compiler_params=pltpu.CompilerParams(dimension_semantics=("arbitrary",)),
    )(x, w, b)


# ----------------------------------------------------------------------------
# Fused bidirectional LSTM (PyTorch gate order i, f, g, o).
#   - both directions' input projections fused into ONE (Bc*T, E)@(E, 8H) matmul,
#   - forward / backward recurrences interleaved per serial step (2 independent
#     matmuls per step -> hides MXU push/pop latency),
#   - per-step stores into out_ref (bounded vreg live ranges).
# ----------------------------------------------------------------------------
def _bilstm_kernel(x_ref, wih_ref, b_ref, whh_f_ref, whh_b_ref, out_ref):
    Bc, T, E = x_ref.shape
    H = whh_f_ref.shape[0]

    x2d = x_ref[...].reshape(Bc * T, E).astype(jnp.bfloat16)
    # hoisted input projection for BOTH directions: one MXU push, N = 8H lanes
    xp = jnp.dot(x2d, wih_ref[...], preferred_element_type=jnp.float32) + b_ref[...]
    xp = xp.reshape(Bc, T, 8 * H)

    whh_f = whh_f_ref[...]
    whh_b = whh_b_ref[...]

    h_f = jnp.zeros((Bc, H), jnp.float32)
    c_f = jnp.zeros((Bc, H), jnp.float32)
    h_b = jnp.zeros((Bc, H), jnp.float32)
    c_b = jnp.zeros((Bc, H), jnp.float32)

    def step(g, c):
        i = _sigmoid(g[:, 0:H])
        f = _sigmoid(g[:, H:2 * H])
        gg = jnp.tanh(g[:, 2 * H:3 * H])
        o = _sigmoid(g[:, 3 * H:4 * H])
        c = f * c + i * gg
        return o * jnp.tanh(c), c

    # TODO(synk): switch the static unroll to lax.fori_loop(unroll=k) for long T.
    for s in range(T):
        tf = s
        tb = T - 1 - s
        # the two directions are independent -> two matmuls the scheduler can overlap
        g_f = xp[:, tf, 0:4 * H] + jnp.dot(h_f.astype(jnp.bfloat16), whh_f,
                                           preferred_element_type=jnp.float32)
        g_b = xp[:, tb, 4 * H:8 * H] + jnp.dot(h_b.astype(jnp.bfloat16), whh_b,
                                               preferred_element_type=jnp.float32)
        h_f, c_f = step(g_f, c_f)
        h_b, c_b = step(g_b, c_b)
        # TODO(synk): 2H = 64 (<128) lane stores are masked; for production consider
        # padding 2H to 128 or writing fw/bw slabs separately (lane-dense stores).
        out_ref[:, tf, 0:H] = h_f
        out_ref[:, tb, H:2 * H] = h_b


def bilstm(x, fw, bw):
    """Bidirectional LSTM, batch_first: (NB, T, E) -> (NB, T, 2H)."""
    NB, T, E = x.shape
    wih_f, whh_f, b_f = fw
    wih_b, whh_b, b_b = bw
    H = whh_f.shape[0]
    # fuse both directions' input projections; pre-cast weights to bf16 once.
    wih = jnp.concatenate([wih_f, wih_b], axis=1).astype(jnp.bfloat16)   # (E, 8H)
    b = jnp.concatenate([b_f, b_b]).reshape(1, 8 * H)
    return pl.pallas_call(
        _bilstm_kernel,
        out_shape=jax.ShapeDtypeStruct((NB, T, 2 * H), jnp.float32),
        grid=(1,),   # single batch chunk: keep full M on the recurrence matmul
        in_specs=[pl.BlockSpec((NB, T, E), lambda i: (0, 0, 0)),
                  pl.BlockSpec((E, 8 * H), lambda i: (0, 0)),
                  pl.BlockSpec((1, 8 * H), lambda i: (0, 0)),
                  pl.BlockSpec((H, 4 * H), lambda i: (0, 0)),
                  pl.BlockSpec((H, 4 * H), lambda i: (0, 0))],
        out_specs=pl.BlockSpec((NB, T, 2 * H), lambda i: (0, 0, 0)),
        compiler_params=pltpu.CompilerParams(dimension_semantics=("arbitrary",)),
    )(x, wih, b, whh_f.astype(jnp.bfloat16), whh_b.astype(jnp.bfloat16))


# ----------------------------------------------------------------------------
# Fused attention + all matching features, whole batch per grid step.
# Produces the full (T, 10l) concat for both sentences directly.
# All matmuls here are f32 (tiny, and the cosine denominators are precision-sensitive).
# ----------------------------------------------------------------------------
def _match_kernel(x1_ref, x2_ref, wsq_ref, wsqt_ref, out_ref):
    x1 = x1_ref[...]                      # (Bb, T, 2H) f32
    x2 = x2_ref[...]                      # (Bb, T, 2H)
    Bb, T, D = x1.shape
    l = wsq_ref.shape[0]
    H = D // 2

    # ---- attention bmm; its "transpose" is computed as a second bmm (no XLU transpose)
    a = jnp.einsum('btd,bsd->bts', x1, x2, preferred_element_type=jnp.float32)
    at = jnp.einsum('bsd,btd->bst', x2, x1, preferred_element_type=jnp.float32)

    # softmax over dim=2 of a, and over dim=1 of a (== dim=2 of at, already transposed)
    e1 = jnp.exp(a - jnp.max(a, axis=2, keepdims=True))
    w1a = e1 * _recip(jnp.sum(e1, axis=2, keepdims=True))
    e2 = jnp.exp(at - jnp.max(at, axis=2, keepdims=True))
    w2a_t = e2 * _recip(jnp.sum(e2, axis=2, keepdims=True))

    x1_attn = jnp.einsum('bts,bsd->btd', w1a, x2, preferred_element_type=jnp.float32)
    x2_attn = jnp.einsum('bst,btd->bsd', w2a_t, x1, preferred_element_type=jnp.float32)

    # "max-attention" path: the reference's in-place masking provably turns the mask
    # into all-ones normalized over dim=2, i.e. a uniform mean over the other sentence
    # (T1 == T2 here).
    x1_mattn = jnp.mean(x2, axis=1, keepdims=True)      # (Bb, 1, 2H)
    x2_mattn = jnp.mean(x1, axis=1, keepdims=True)      # (Bb, 1, 2H)

    x1_fw, x1_bw = x1[..., :H], x1[..., H:]
    x2_fw, x2_bw = x2[..., :H], x2[..., H:]
    a1_fw, a1_bw = x1_attn[..., :H], x1_attn[..., H:]
    a2_fw, a2_bw = x2_attn[..., :H], x2_attn[..., H:]
    m1_fw, m1_bw = x1_mattn[..., :H], x1_mattn[..., H:]
    m2_fw, m2_bw = x2_mattn[..., :H], x2_mattn[..., H:]
    m1_fw_b = jnp.broadcast_to(m1_fw, (Bb, T, H))
    m1_bw_b = jnp.broadcast_to(m1_bw, (Bb, T, H))
    m2_fw_b = jnp.broadcast_to(m2_fw, (Bb, T, H))
    m2_bw_b = jnp.broadcast_to(m2_bw, (Bb, T, H))

    wsq = wsq_ref[...]        # (l, H) == w*w
    wsqt = wsqt_ref[...]      # (H, l)

    def mm_wsq(mats):
        # Stack many (Bb, T, H) operands into ONE (Bb*k*T, H) @ (H, l) MXU push.
        k = len(mats)
        cat = jnp.concatenate(mats, axis=1)                       # (Bb, k*T, H)
        res = jnp.dot(cat.reshape(Bb * k * T, H), wsqt,
                      preferred_element_type=jnp.float32).reshape(Bb, k * T, l)
        return [res[:, i * T:(i + 1) * T, :] for i in range(k)]

    # --- all perspective norms in one push (base norms reused everywhere) ---
    sq_in = [x1_fw, x1_bw, x2_fw, x2_bw, a1_fw, a1_bw, a2_fw, a2_bw,
             m1_fw_b, m1_bw_b, m2_fw_b, m2_bw_b]
    (n_x1f, n_x1b, n_x2f, n_x2b, n_a1f, n_a1b, n_a2f, n_a2b,
     n_m1f, n_m1b, n_m2f, n_m2b) = [jnp.sqrt(r) for r in mm_wsq([v * v for v in sq_in])]

    # --- all cosine numerators in one push ---
    last2_fw = x2_fw[:, T - 1:T, :]
    last2_bw = x2_bw[:, T - 1:T, :]
    last1_fw = x1_fw[:, T - 1:T, :]
    last1_bw = x1_bw[:, T - 1:T, :]
    num_in = [x1_fw * last2_fw, x1_bw * last2_bw, x2_fw * last1_fw, x2_bw * last1_bw,
              x1_fw * a1_fw, x1_bw * a1_bw, x2_fw * a2_fw, x2_bw * a2_bw,
              x1_fw * m1_fw, x1_bw * m1_bw, x2_fw * m2_fw, x2_bw * m2_bw]
    nums = mm_wsq(num_in)

    def cosd(num, nv1, nv2):
        return num / jnp.maximum(nv1 * nv2, 1e-8)

    full1 = cosd(nums[0], n_x1f, n_x2f[:, T - 1:T, :])
    full2 = cosd(nums[1], n_x1b, n_x2b[:, T - 1:T, :])
    full3 = cosd(nums[2], n_x2f, n_x1f[:, T - 1:T, :])
    full4 = cosd(nums[3], n_x2b, n_x1b[:, T - 1:T, :])
    att1 = cosd(nums[4], n_x1f, n_a1f)
    att2 = cosd(nums[5], n_x1b, n_a1b)
    att3 = cosd(nums[6], n_x2f, n_a2f)
    att4 = cosd(nums[7], n_x2b, n_a2b)
    matt1 = cosd(nums[8], n_x1f, n_m1f)
    matt2 = cosd(nums[9], n_x1b, n_m1b)
    matt3 = cosd(nums[10], n_x2f, n_m2f)
    matt4 = cosd(nums[11], n_x2b, n_m2b)

    def maxpool(v1, v2, n1, n2):
        # single (Bb, l*T, H) x (Bb, T, H) batched push for all l perspectives
        lhs = jnp.concatenate([v1 * wsq[li:li + 1, :] for li in range(l)], axis=1)
        prod = jnp.einsum('bmh,bsh->bms', lhs, v2,
                          preferred_element_type=jnp.float32)     # (Bb, l*T, T)
        n2t = jnp.swapaxes(n2, 1, 2)                              # (Bb, l, T)
        mpa, mpb, apa, apb = [], [], [], []
        for li in range(l):                                        # static, VPU-only
            p = prod[:, li * T:(li + 1) * T, :]                    # (Bb, T, T)
            den = n1[:, :, li:li + 1] * n2t[:, li:li + 1, :] + 1e-8
            tmp = p / den
            mpa.append(jnp.max(tmp, axis=1))
            mpb.append(jnp.max(tmp, axis=2))
            apa.append(jnp.mean(tmp, axis=1))
            apb.append(jnp.mean(tmp, axis=2))
        stk = lambda xs: jnp.stack(xs, axis=-1)                    # (Bb, T, l)
        return stk(mpa), stk(mpb), stk(apa), stk(apb)

    mp1, mp2, ap1, ap2 = maxpool(x1_fw, x2_fw, n_x1f, n_x2f)
    mp3, mp4, ap3, ap4 = maxpool(x1_bw, x2_bw, n_x1b, n_x2b)

    # TODO(synk): 10*l = 40 (<128) lane store is masked; for production pad to 128.
    out_ref[0] = jnp.concatenate(
        [full1, full2, att1, att2, mp1, mp2, ap1, ap2, matt1, matt2], axis=-1)
    out_ref[1] = jnp.concatenate(
        [full3, full4, att3, att4, mp3, mp4, ap3, ap4, matt3, matt4], axis=-1)


def fused_matching(enc, B, wsq):
    """enc: (2B, T, 2H) with rows [x1 batch..., x2 batch...] -> (2B, T, 10l) concat."""
    NB, T, D = enc.shape
    l, H = wsq.shape
    Bb = B                        # whole batch per step at these sizes
    nblk = B // Bb
    # TODO(synk): at production B tile over batch chunks (Bb < B) to bound VMEM.
    out = pl.pallas_call(
        _match_kernel,
        out_shape=jax.ShapeDtypeStruct((2, B, T, 10 * l), jnp.float32),
        grid=(nblk,),
        in_specs=[pl.BlockSpec((Bb, T, D), lambda i: (i, 0, 0)),
                  pl.BlockSpec((Bb, T, D), lambda i: (i + nblk, 0, 0)),
                  pl.BlockSpec((l, H), lambda i: (0, 0)),
                  pl.BlockSpec((H, l), lambda i: (0, 0))],
        out_specs=pl.BlockSpec((2, Bb, T, 10 * l), lambda i: (0, i, 0, 0)),
        compiler_params=pltpu.CompilerParams(dimension_semantics=("arbitrary",)),
    )(enc, enc, wsq, wsq.T)
    return out.reshape(2 * B, T, 10 * l)


# ----------------------------------------------------------------------------
# Head: max/mean pooling over time, single K=8H matmul, relu, last layer, softmax.
# ----------------------------------------------------------------------------
def _make_head_kernel(B):
    def kernel(y_ref, w1_ref, b1_ref, w2_ref, b2_ref, out_ref):
        y = y_ref[...]                        # (2B, T, 2H), rows [y1..., y2...]
        y1 = y[:B]
        y2 = y[B:]
        f = jnp.concatenate([jnp.max(y1, axis=1), jnp.mean(y1, axis=1),
                             jnp.max(y2, axis=1), jnp.mean(y2, axis=1)], axis=-1)
        h = jnp.dot(f.astype(jnp.bfloat16), w1_ref[...],
                    preferred_element_type=jnp.float32) + b1_ref[...]
        h = jnp.maximum(h, 0.0)               # dropout = identity (inference)
        logits = jnp.dot(h.astype(jnp.bfloat16), w2_ref[...],
                         preferred_element_type=jnp.float32) + b2_ref[...]
        e = jnp.exp(logits - jnp.max(logits, axis=1, keepdims=True))
        out_ref[...] = e * _recip(jnp.sum(e, axis=1, keepdims=True))
    return kernel


def head(y, B, w1, b1, w2, b2):
    NB, T, D = y.shape
    Hf = w1.shape[1]
    C = w2.shape[1]
    # TODO(synk): at production B tile the grid over batch chunks for DMA/compute overlap.
    return pl.pallas_call(
        _make_head_kernel(B),
        out_shape=jax.ShapeDtypeStruct((B, C), jnp.float32),
        grid=(1,),
        in_specs=[pl.BlockSpec((NB, T, D), lambda i: (0, 0, 0)),
                  pl.BlockSpec((4 * D, Hf), lambda i: (0, 0)),
                  pl.BlockSpec((1, Hf), lambda i: (0, 0)),
                  pl.BlockSpec((Hf, C), lambda i: (0, 0)),
                  pl.BlockSpec((1, C), lambda i: (0, 0))],
        out_specs=pl.BlockSpec((B, C), lambda i: (0, 0)),
        compiler_params=pltpu.CompilerParams(dimension_semantics=("arbitrary",)),
    )(y, w1.astype(jnp.bfloat16), b1.reshape(1, Hf), w2.astype(jnp.bfloat16),
      b2.reshape(1, C))


# ----------------------------------------------------------------------------
# Full BIMPM forward (x1 and x2 are stacked along batch so every stage is one call)
# ----------------------------------------------------------------------------
def bimpm_forward(params, x1_idx, x2_idx):
    p = params
    B, T = x1_idx.shape

    # TODO(synk): embedding lookup is a data-dependent gather, left to XLA (could be
    # folded into the HighWay kernel with PrefetchScalarGridSpec row-gather).
    idx = jnp.concatenate([x1_idx, x2_idx], axis=0)            # (2B, T)
    e = p["embedding"][idx]                                    # (2B, T, E)

    # HighWay (+ dropout, identity in eval mode)
    e = highway(e.reshape(2 * B * T, -1), p["hw_wt"], p["hw_bt"],
                p["hw_wh"], p["hw_bh"]).reshape(2 * B, T, -1)

    enc = bilstm(e, p["enc_fw"], p["enc_bw"])                  # (2B, T, 2H)

    wsq = p["match_w"] * p["match_w"]                          # hoisted out of the kernel
    concat = fused_matching(enc, B, wsq)                       # (2B, T, 10l)

    y = bilstm(concat, p["comp_fw"], p["comp_bw"])             # (2B, T, 2H)

    return head(y, B, p["fc1_w"], p["fc1_b"], p["last_w"], p["last_b"])


# ----------------------------------------------------------------------------
# Deterministic parameter initialization (same shapes as the PyTorch module).
# ----------------------------------------------------------------------------
def init_params(key, vocab, emb_size, hid, l):
    keys = iter(jax.random.split(key, 32))

    def u(shape, scale):
        return jax.random.uniform(next(keys), shape, jnp.float32, -scale, scale)

    H, E = hid, emb_size
    s = 1.0 / math.sqrt(H)
    params = {}
    params["embedding"] = u((vocab, E), 0.5)
    params["hw_wh"] = u((H, H), s)
    params["hw_bh"] = u((H,), s)
    params["hw_wt"] = u((H, H), s)
    params["hw_bt"] = u((H,), s)

    def lstm_params(in_size):
        sc = 1.0 / math.sqrt(H)
        w_ih = u((in_size, 4 * H), sc)          # transposed vs torch (4H, in)
        w_hh = u((H, 4 * H), sc)                # transposed vs torch (4H, H)
        b = u((4 * H,), sc) + u((4 * H,), sc)   # b_ih + b_hh combined
        return (w_ih, w_hh, b)

    params["enc_fw"] = lstm_params(E)
    params["enc_bw"] = lstm_params(E)
    params["comp_fw"] = lstm_params(l * 10)
    params["comp_bw"] = lstm_params(l * 10)
    params["match_w"] = u((l, H), s)
    params["fc1_w"] = u((H * 8, H), 1.0 / math.sqrt(H * 8))     # transposed vs torch
    params["fc1_b"] = u((H,), 1.0 / math.sqrt(H * 8))
    params["last_w"] = u((H, 4), s)                             # transposed vs torch
    params["last_b"] = u((4,), s)
    return params


if __name__ == "__main__":
    # emb_size == hid_size (required by the HighWay in the reference model)
    VOCAB, EMB, HID, L, B, T = 50, 32, 32, 4, 2, 8
    key = jax.random.PRNGKey(0)
    kp, k1, k2 = jax.random.split(key, 3)
    params = init_params(kp, VOCAB, EMB, HID, L)
    x1 = jax.random.randint(k1, (B, T), 0, VOCAB)
    x2 = jax.random.randint(k2, (B, T), 0, VOCAB)

    out = bimpm_forward(params, x1, x2)
    out = jax.block_until_ready(out)
    assert out.shape == (B, 4)
    assert bool(jnp.all(jnp.isfinite(out)))
    print("KERNEL_OK")
</pallas_src>

<mosaic_0001>
module attributes {stable_mosaic.version = 11 : i64} {
  func.func @_highway_kernel(%arg0: i32, %arg1: memref<32x32xf32, #tpu.memory_space<vmem>>, %arg2: memref<32x64xbf16, #tpu.memory_space<vmem>>, %arg3: memref<1x64xf32, #tpu.memory_space<vmem>>, %arg4: memref<32x32xf32, #tpu.memory_space<vmem>>) attributes {dimension_semantics = [#tpu.dimension_semantics<arbitrary>], iteration_bounds = array<i64: 1>, scalar_prefetch = 0 : i64, scratch_operands = 0 : i64, tpu.core_type = #tpu.core_type<tc>, window_params = [{pipeline_mode = #tpu.pipeline_mode<synchronous>, transform_indices = @transform_0, window_bounds = array<i64: 32, 32>}, {pipeline_mode = #tpu.pipeline_mode<synchronous>, transform_indices = @transform_1, window_bounds = array<i64: 32, 64>}, {pipeline_mode = #tpu.pipeline_mode<synchronous>, transform_indices = @transform_2, window_bounds = array<i64: 1, 64>}, {pipeline_mode = #tpu.pipeline_mode<synchronous>, transform_indices = @transform_3, window_bounds = array<i64: 32, 32>}]} {
    %c0 = arith.constant 0 : index
    %c0_0 = arith.constant 0 : index
    %0 = vector.load %arg1[%c0, %c0_0] : memref<32x32xf32, #tpu.memory_space<vmem>>, vector<32x32xf32>
    %1 = arith.truncf %0 : vector<32x32xf32> to vector<32x32xbf16>
    %c0_1 = arith.constant 0 : index
    %c0_2 = arith.constant 0 : index
    %2 = vector.load %arg2[%c0_1, %c0_2] : memref<32x64xbf16, #tpu.memory_space<vmem>>, vector<32x64xbf16>
    %cst = arith.constant dense<0.000000e+00> : vector<32x64xf32>
    %3 = tpu.matmul %1, %2, %cst {dimension_numbers = #tpu.dot_dimension_numbers<[1], [0], [0], [1], [0, 0, 1, 1], [], []>} : vector<32x32xbf16>, vector<32x64xbf16>, vector<32x64xf32> -> vector<32x64xf32>
    %c0_3 = arith.constant 0 : index
    %c0_4 = arith.constant 0 : index
    %4 = vector.load %arg3[%c0_3, %c0_4] : memref<1x64xf32, #tpu.memory_space<vmem>>, vector<1x64xf32>
    %5 = vector.broadcast %4 : vector<1x64xf32> to vector<32x64xf32>
    %6 = arith.addf %3, %5 : vector<32x64xf32>
    %7 = vector.extract_strided_slice %6 {offsets = [0, 0], sizes = [32, 32], strides = [1, 1]} : vector<32x64xf32> to vector<32x32xf32>
    %cst_5 = arith.constant 0.000000e+00 : f32
    %8 = vector.broadcast %cst_5 : f32 to vector<32x32xf32>
    %9 = arith.subf %8, %7 : vector<32x32xf32>
    %10 = math.exp %9 : vector<32x32xf32>
    %cst_6 = arith.constant 1.000000e+00 : f32
    %11 = vector.broadcast %cst_6 : f32 to vector<32x32xf32>
    %12 = arith.addf %11, %10 : vector<32x32xf32>
    %cst_7 = arith.constant 1.000000e+00 : f32
    %13 = vector.broadcast %cst_7 : f32 to vector<32x32xf32>
    %14 = arith.divf %13, %12 : vector<32x32xf32>
    %15 = vector.extract_strided_slice %6 {offsets = [0, 32], sizes = [32, 32], strides = [1, 1]} : vector<32x64xf32> to vector<32x32xf32>
    %cst_8 = arith.constant 0.000000e+00 : f32
    %16 = vector.broadcast %cst_8 : f32 to vector<32x32xf32>
    %17 = arith.maximumf %15, %16 : vector<32x32xf32>
    %18 = arith.mulf %14, %17 : vector<32x32xf32>
    %cst_9 = arith.constant 1.000000e+00 : f32
    %19 = vector.broadcast %cst_9 : f32 to vector<32x32xf32>
    %20 = arith.subf %19, %14 : vector<32x32xf32>
    %21 = arith.mulf %20, %0 : vector<32x32xf32>
    %22 = arith.addf %18, %21 : vector<32x32xf32>
    %c0_10 = arith.constant 0 : index
    %c0_11 = arith.constant 0 : index
    %23 = vector.load %arg4[%c0_10, %c0_11] : memref<32x32xf32, #tpu.memory_space<vmem>>, vector<32x32xf32>
    tpu.vector_store %arg4[%c0_10, %c0_11], %22 {strides = array<i32>} : memref<32x32xf32, #tpu.memory_space<vmem>>, vector<32x32xf32>,
    return
  }
  func.func @transform_0(%arg0: i32) -> (i32, i32) {
    %c0_i32 = arith.constant 0 : i32
    %c0_i32_0 = arith.constant 0 : i32
    %c0_i32_1 = arith.constant 0 : i32
    return %c0_i32, %c0_i32_0 : i32, i32
  }
  func.func @transform_1(%arg0: i32) -> (i32, i32) {
    %c0_i32 = arith.constant 0 : i32
    %c0_i32_0 = arith.constant 0 : i32
    %c0_i32_1 = arith.constant 0 : i32
    return %c0_i32, %c0_i32_0 : i32, i32
  }
  func.func @transform_2(%arg0: i32) -> (i32, i32) {
    %c0_i32 = arith.constant 0 : i32
    %c0_i32_0 = arith.constant 0 : i32
    %c0_i32_1 = arith.constant 0 : i32
    return %c0_i32, %c0_i32_0 : i32, i32
  }
  func.func @transform_3(%arg0: i32) -> (i32, i32) {
    %c0_i32 = arith.constant 0 : i32
    %c0_i32_0 = arith.constant 0 : i32
    %c0_i32_1 = arith.constant 0 : i32
    return %c0_i32, %c0_i32_0 : i32, i32
  }
}

</mosaic_0001>

<llo_original>
// kernel: tpu_custom_call.1
$region0: #{tpu_custom_call.1}
  #allocation0 [shape = 'u32[]', space=smem, size = 0x4, offset = 0x4, fixed_abs, tag = 'smem constant byte address 0x4 - core index']
  #allocation1 [shape = 'u32[144,128]{1,0:T(1,128)}', space=vmem, size = 0x12000, scoped, tag = 'internal scratch']
  %s0 = inlined_call_operand.hbm [shape: f32[32,32], index: 0, kind: input, shape index: {}]
  %s1 = inlined_call_operand.hbm [shape: bf16[32,64], index: 1, kind: input, shape index: {}]
  %s2 = inlined_call_operand.vmem [shape: f32[1,64], index: 2, kind: input, shape index: {}]
  %s3 = inlined_call_operand.hbm [shape: f32[32,32], index: 3, kind: output, shape index: {}]
  %s4 = sld [smem:[#allocation0]]
  $region30: #{tpu_custom_call.1} parent=0
    _
  %s6 = ssub.s32 1, %s4
  %s7 = scalar_select 0, %s6, %s4
  $region1: #{tpu_custom_call.1} parent=0
    #allocation2 [shape = 'u8[16384]{0}', space=vmem, size = 0x4000, scoped, tag = 'input window, operand 0, single buffered']
    #allocation3 [shape = 's32[1]{0}', space=sflag, size = 0x4, scoped, tag = 'scoped memory for tpu_custom_call.1']
    #allocation4 [shape = 's32[1]{0}', space=sflag, size = 0x4, scoped, tag = 'scoped memory for tpu_custom_call.1']
    #allocation5 [shape = 'u8[8192]{0}', space=vmem, size = 0x2000, scoped, tag = 'input window, operand 1, single buffered']
    #allocation6 [shape = 's32[1]{0}', space=sflag, size = 0x4, scoped, tag = 'scoped memory for tpu_custom_call.1']
    #allocation7 [shape = 'u8[16384]{0}', space=vmem, size = 0x4000, scoped, tag = 'output window, operand 0, single buffered']
    %8 = vsyncpa [#allocation3], 0
    %9 = vsyncpa [#allocation6], 0
    %10 = vsyncpa [#allocation4], 0
    // Predicated region
    $region2: #{tpu_custom_call.1} parent=1 // pred_check
      _
    $region3: #{tpu_custom_call.1} parent=1 // pred_check_branch
      %12 = sbr.rel (0) target = $region5
    $region4: #{tpu_custom_call.1} parent=1 // pred_region
      %s14 = ssub.s32 512, 512
      %15 = vsyncadd [#allocation3], %s14
      %s16 = sshll.u32 [#allocation2], 4
      %s17 = int_to_ptr.vmem [resolvable:$true] %s16
      %22 = dma.hbm_to_vmem [thread:$0]  %s0, 512, %s17, [#allocation3], 128, 128, 8
    $region5: #{tpu_custom_call.1} parent=1 // pred_fallthru
      _
    // Predicated region
    $region6: #{tpu_custom_call.1} parent=1 // pred_check
      _
    $region7: #{tpu_custom_call.1} parent=1 // pred_check_branch
      %24 = sbr.rel (0) target = $region9
    $region8: #{tpu_custom_call.1} parent=1 // pred_region
      %s26 = ssub.s32 256, 256
      %27 = vsyncadd [#allocation6], %s26
      %s28 = sshll.u32 [#allocation5], 4
      %s29 = int_to_ptr.vmem [resolvable:$true] %s28
      %34 = dma.hbm_to_vmem [thread:$0]  %s1, 256, %s29, [#allocation6], 64, 64, 4
    $region9: #{tpu_custom_call.1} parent=1 // pred_fallthru
      _
    // Predicated region
    $region10: #{tpu_custom_call.1} parent=1 // pred_check
      _
    $region11: #{tpu_custom_call.1} parent=1 // pred_check_branch
      %36 = sbr.rel (0) target = $region13
    $region12: #{tpu_custom_call.1} parent=1 // pred_region
      _
    $region13: #{tpu_custom_call.1} parent=1 // pred_fallthru
      _
    // Predicated region
    $region14: #{tpu_custom_call.1} parent=1 // pred_check
      _
    $region15: #{tpu_custom_call.1} parent=1 // pred_check_branch
      %38 = sbr.rel (0) target = $region17
    $region16: #{tpu_custom_call.1} parent=1 // pred_region
      %39 = dma.done [#allocation3], 512
    $region17: #{tpu_custom_call.1} parent=1 // pred_fallthru
      _
    // Predicated region
    $region18: #{tpu_custom_call.1} parent=1 // pred_check
      _
    $region19: #{tpu_custom_call.1} parent=1 // pred_check_branch
      %41 = sbr.rel (0) target = $region21
    $region20: #{tpu_custom_call.1} parent=1 // pred_region
      %42 = dma.done [#allocation6], 256
    $region21: #{tpu_custom_call.1} parent=1 // pred_fallthru
      _
    %v44 = vld [vmem:[#allocation2] sm:$0xff]
    %v45 = vld [vmem:[#allocation2 + $0x8] sm:$0xff]
    %v46 = vld [vmem:[#allocation2 + $0x10] sm:$0xff]
    %v47 = vld [vmem:[#allocation2 + $0x18] sm:$0xff]
    %v48 = vpack.c.bf16 %v45, %v44
    %v49 = vpack.c.bf16 %v47, %v46
    %v50 = vld [vmem:[#allocation5] sm:$0xf]
    %v51 = vld [vmem:[#allocation5 + $0x4] sm:$0xf]
    %v52 = vld [vmem:[#allocation5 + $0x8] sm:$0xf]
    %v53 = vld [vmem:[#allocation5 + $0xc] sm:$0xf]
    %v54 = vld [vmem:[%s2] sm:$0x1]
    %v56 = vlaneseq
    %v57 = vshrl.u32 %v56, 7
    %v58 = vsub.s32 0, %v57
    %v59 = vrot.slane %v54, %v58
    %v65 = vunpack.c.l.b16 %v50
    %v66 = vunpack.c.l.b16 %v51
    %v67 = vunpack.c.l.b16 %v52
    %v68 = vunpack.c.l.b16 %v53
    %v69 = vpack.c.b16 %v66, %v65
    %v70 = vpack.c.b16 %v68, %v67
    %vm73 = vcmask 261120
    %v75 = vsel %vm73, %v48, 0
    %v78 = vsel %vm73, %v49, 0
    %80 = vmatprep.subr.bf16.mxu0 0
    %81 = vmatpush1.bf16.msra.mxu0 %v69
    %82 = vmatprep.subr.bf16.mxu0 0
    %83 = vmatpush1.bf16.msra.mxu0 %v70
    %84 = vmatprep.subr.bf16.mxu0 0
    %85 = vmatpush1.bf16.msra.mxu0 0
    %86 = vmatprep.subr.bf16.mxu0 0
    %87 = vmatpush1.bf16.msra.mxu0 0
    %88 = vmatprep.subr.bf16.mxu0 0
    %89 = vmatpush1.bf16.msra.mxu0 0
    %90 = vmatprep.subr.bf16.mxu0 0
    %91 = vmatpush1.bf16.msra.mxu0 0
    %92 = vmatprep.subr.bf16.mxu0 0
    %93 = vmatpush1.bf16.msra.mxu0 0
    %94 = vmatprep.subr.bf16.mxu0 0
    %95 = vmatpush1.bf16.msra.mxu0 0
    %96 = vmatprep.subr.bf16.mxu0 0
    %97 = vmatpush1.bf16.msra.mxu0 0
    %98 = vmatprep.subr.bf16.mxu0 0
    %99 = vmatpush1.bf16.msra.mxu0 0
    %100 = vmatprep.subr.bf16.mxu0 0
    %101 = vmatpush1.bf16.msra.mxu0 0
    %102 = vmatprep.subr.bf16.mxu0 0
    %103 = vmatpush1.bf16.msra.mxu0 0
    %104 = vmatprep.subr.bf16.mxu0 0
    %105 = vmatpush1.bf16.msra.mxu0 0
    %106 = vmatprep.subr.bf16.mxu0 0
    %107 = vmatpush1.bf16.msra.mxu0 0
    %108 = vmatprep.subr.bf16.mxu0 0
    %109 = vmatpush1.bf16.msra.mxu0 0
    %110 = vmatprep.subr.bf16.mxu0 0
    %111 = vmatpush1.bf16.msra.mxu0 0
    %112 = vmatprep.mubr.bf16.mxu0 0
    %113 = vmatmul.mubr.bf16.gmra.mrb[0].mxu0 %v75
    %v114 = vpop.f32.mrb[0].mxu0
    %v115 = vadd.f32 %v59, %v114
    %v116 = vpop.f32.mrb[0].mxu0
    %v117 = vpop.f32.mrb[0].mxu0
    %v118 = vadd.f32 %v59, %v117
    %v119 = vpop.f32.mrb[0].mxu0
    %120 = vmatprep.mubr.bf16.mxu0 0
    %121 = vmatmul.mubr.bf16.gmra.mrb[0].mxu0 %v78
    %v122 = vpop.f32.mrb[0].mxu0
    %v123 = vadd.f32 %v59, %v122
    %v124 = vpop.f32.mrb[0].mxu0
    %v125 = vpop.f32.mrb[0].mxu0
    %v126 = vadd.f32 %v59, %v125
    %v127 = vpop.f32.mrb[0].mxu0
    %128 = vdwg.mxu0
    %v129 = vsub.f32 0.0, %v115
    %v130 = vsub.f32 0.0, %v118
    %v131 = vsub.f32 0.0, %v123
    %v132 = vsub.f32 0.0, %v126
    %v133 = vmul.f32 %v129, 1.442695
    %v134 = vpow.pop %v133
    %v135 = vmul.f32 %v130, 1.442695
    %v136 = vpow.pop %v135
    %v137 = vmul.f32 %v131, 1.442695
    %v138 = vpow.pop %v137
    %v139 = vmul.f32 %v132, 1.442695
    %v140 = vpow.pop %v139
    %v141 = vadd.f32 %v134, 1.0
    %v142 = vadd.f32 %v136, 1.0
    %v143 = vadd.f32 %v138, 1.0
    %v144 = vadd.f32 %v140, 1.0
    %v145 = vrcp.pop %v141
    %v146 = vmul.f32 1.0, %v145
    %v147 = vrcp.pop %v142
    %v148 = vmul.f32 1.0, %v147
    %v149 = vrcp.pop %v143
    %v150 = vmul.f32 1.0, %v149
    %v151 = vrcp.pop %v144
    %v152 = vmul.f32 1.0, %v151
    %v153 = vmax.f32 %v115, 0.0
    %v154 = vmax.f32 %v118, 0.0
    %v155 = vmax.f32 %v123, 0.0
    %v156 = vmax.f32 %v126, 0.0
    %161 = vrot.lane.b32.xlu0 %v153, 96
    %v162 = vpop.permute.xlu0 %161
    %163 = vrot.lane.b32.xlu0 %v154, 96
    %v164 = vpop.permute.xlu0 %163
    %165 = vrot.lane.b32.xlu0 %v155, 96
    %v166 = vpop.permute.xlu0 %165
    %167 = vrot.lane.b32.xlu0 %v156, 96
    %v168 = vpop.permute.xlu0 %167
    %v173 = vmul.f32 %v146, %v162
    %v174 = vmul.f32 %v148, %v164
    %v175 = vmul.f32 %v150, %v166
    %v176 = vmul.f32 %v152, %v168
    %v177 = vsub.f32 1.0, %v146
    %v178 = vsub.f32 1.0, %v148
    %v179 = vsub.f32 1.0, %v150
    %v180 = vsub.f32 1.0, %v152
    %v181 = vmul.f32 %v177, %v44
    %v182 = vmul.f32 %v178, %v45
    %v183 = vmul.f32 %v179, %v46
    %v184 = vmul.f32 %v180, %v47
    %v185 = vadd.f32 %v173, %v181
    %v186 = vadd.f32 %v174, %v182
    %v187 = vadd.f32 %v175, %v183
    %v188 = vadd.f32 %v176, %v184
    %189 = vst.msk [vmem:[#allocation7] sm:$0xff] %vm73, %v185
    %190 = vst.msk [vmem:[#allocation7 + $0x8] sm:$0xff] %vm73, %v186
    %191 = vst.msk [vmem:[#allocation7 + $0x10] sm:$0xff] %vm73, %v187
    %192 = vst.msk [vmem:[#allocation7 + $0x18] sm:$0xff] %vm73, %v188
    // Predicated region
    $region22: #{tpu_custom_call.1} parent=1 // pred_check
      _
    $region23: #{tpu_custom_call.1} parent=1 // pred_check_branch
      %194 = sbr.rel (0) target = $region25
    $region24: #{tpu_custom_call.1} parent=1 // pred_region
      %s196 = ssub.s32 512, 512
      %197 = vsyncadd [#allocation4], %s196
      %s198 = sshll.u32 [#allocation7], 4
      %s199 = int_to_ptr.vmem [resolvable:$true] %s198
      %204 = dma.vmem_to_hbm [thread:$0]  %s199, 512, %s3, [#allocation4], 128, 128, 8
    $region25: #{tpu_custom_call.1} parent=1 // pred_fallthru
      _
    // Predicated region
    $region26: #{tpu_custom_call.1} parent=1 // pred_check
      _
    $region27: #{tpu_custom_call.1} parent=1 // pred_check_branch
      %206 = sbr.rel (0) target = $region29
    $region28: #{tpu_custom_call.1} parent=1 // pred_region
      %207 = dma.done [#allocation4], 512
    $region29: #{tpu_custom_call.1} parent=1 // pred_fallthru
      _
    %208 = vsyncpa [#allocation3], 1
    %209 = vsyncpa [#allocation6], 1
    %210 = vsyncpa [#allocation4], 1

</llo_original>
